<compile_context>
chip_gen: v5e
topology: v5e:2x2
jax: 0.10.0
libtpu: 0.0.40
codegen_flags: <defaults>
</compile_context>

<pallas_src>
import functools
import math

import jax
import jax.numpy as jnp
from jax import lax
from jax.experimental import pallas as pl
from jax.experimental.pallas import tpu as pltpu


ACT_DTYPE = jnp.bfloat16
_VMEM_LIMIT = 32 * 1024 * 1024


def _round_up(x, m):
    return ((x + m - 1) // m) * m


# ----------------------------------------------------------------------------
# Pallas kernels
# ----------------------------------------------------------------------------
def _make_conv_mm_kernel(has_affine, has_residual, relu):
    """Single-pass MXU matmul with fused scale/shift, residual add, ReLU epilogue."""

    def kernel(*refs):
        idx = 0
        a_ref = refs[idx]; idx += 1
        b_ref = refs[idx]; idx += 1
        s_ref = t_ref = r_ref = None
        if has_affine:
            s_ref = refs[idx]; idx += 1
            t_ref = refs[idx]; idx += 1
        if has_residual:
            r_ref = refs[idx]; idx += 1
        o_ref = refs[idx]

        acc = jnp.dot(a_ref[...], b_ref[...],
                      preferred_element_type=jnp.float32)
        if has_affine:
            acc = acc * s_ref[...] + t_ref[...]
        if has_residual:
            acc = acc + r_ref[...].astype(jnp.float32)
        if relu:
            acc = jnp.maximum(acc, 0.0)
        o_ref[...] = acc.astype(o_ref.dtype)

    return kernel


def _bn_relu_kernel(x_ref, s_ref, t_ref, o_ref):
    x = x_ref[...].astype(jnp.float32)
    o_ref[...] = jnp.maximum(x * s_ref[...] + t_ref[...], 0.0).astype(o_ref.dtype)


def _head_kernel(x_ref, s_ref, t_ref, w_ref, o_ref, *, denom):
    # x: (N, S, C).  Non-affine BN + ReLU + global average pool + FC.
    x = x_ref[...].astype(jnp.float32)
    x = jnp.maximum(x * s_ref[...] + t_ref[...], 0.0)
    pooled = jnp.sum(x, axis=1) * (1.0 / denom)            # (N, C)
    o_ref[...] = jnp.dot(pooled, w_ref[...],
                         preferred_element_type=jnp.float32)


# ----------------------------------------------------------------------------
# Pallas wrappers
# ----------------------------------------------------------------------------
def _fused_conv_matmul(a, w, scale=None, shift=None, residual=None,
                       relu=False, out_dtype=ACT_DTYPE):
    """a: (M, K) im2col patches (bf16), w: (K, O) packed weight (bf16).
    Computes relu?((a @ w) * scale + shift + residual), f32 accumulation."""
    M, K = a.shape
    K2, O = w.shape
    assert K == K2

    # Row tile ~512, but keep >=2 grid blocks when M allows (2 TCs on v7x).
    tm = min(512, _round_up(max(8, (M + 1) // 2), 8))
    Mp = _round_up(M, tm)
    if Mp != M:
        a = jnp.pad(a, ((0, Mp - M), (0, 0)))

    inputs = [a, w]
    in_specs = [pl.BlockSpec((tm, K), lambda i: (i, 0)),
                pl.BlockSpec((K, O), lambda i: (0, 0))]
    has_affine = scale is not None
    if has_affine:
        inputs += [scale.reshape(1, O).astype(jnp.float32),
                   shift.reshape(1, O).astype(jnp.float32)]
        in_specs += [pl.BlockSpec((1, O), lambda i: (0, 0)),
                     pl.BlockSpec((1, O), lambda i: (0, 0))]
    has_residual = residual is not None
    if has_residual:
        if Mp != M:
            residual = jnp.pad(residual, ((0, Mp - M), (0, 0)))
        inputs.append(residual)
        in_specs.append(pl.BlockSpec((tm, O), lambda i: (i, 0)))

    bytes_accessed = int(
        a.size * a.dtype.itemsize + w.size * w.dtype.itemsize
        + Mp * O * jnp.dtype(out_dtype).itemsize
        + (Mp * O * residual.dtype.itemsize if has_residual else 0))
    cost = pl.CostEstimate(flops=2 * Mp * K * O, transcendentals=0,
                           bytes_accessed=bytes_accessed)

    out = pl.pallas_call(
        _make_conv_mm_kernel(has_affine, has_residual, relu),
        out_shape=jax.ShapeDtypeStruct((Mp, O), out_dtype),
        grid_spec=pltpu.PrefetchScalarGridSpec(
            num_scalar_prefetch=0,
            grid=(Mp // tm,),
            in_specs=in_specs,
            out_specs=pl.BlockSpec((tm, O), lambda i: (i, 0))),
        compiler_params=pltpu.CompilerParams(
            dimension_semantics=("parallel",),
            vmem_limit_bytes=_VMEM_LIMIT),
        cost_estimate=cost,
    )(*inputs)
    return out[:M] if Mp != M else out


def conv3d_fused(x, w_packed, ksize, stride, padding, *,
                 scale=None, shift=None, residual=None, relu=False,
                 out_dtype=ACT_DTYPE):
    """x: (N, D, H, W, C) channels-last; w_packed: (C*kd*kh*kw, O), channel-major.
    Returns (N, Do, Ho, Wo, O) with the optional fused epilogue applied."""
    N, D, H, W, C = x.shape
    kd, kh, kw = ksize
    K, O = w_packed.shape
    assert K == C * kd * kh * kw
    # im2col (glue).  Patch feature ordering is channel-major (C, kd, kh, kw),
    # matching the packed PyTorch weight reshape; verified in _self_test_conv.
    patches = lax.conv_general_dilated_patches(
        x, filter_shape=(kd, kh, kw), window_strides=tuple(stride),
        padding=[(padding[0], padding[0]),
                 (padding[1], padding[1]),
                 (padding[2], padding[2])],
        dimension_numbers=("NDHWC", "DHWIO", "NDHWC"))
    _, Do, Ho, Wo, _ = patches.shape
    M = N * Do * Ho * Wo
    a = patches.reshape(M, K)
    res2d = None if residual is None else residual.reshape(M, O)
    out = _fused_conv_matmul(a, w_packed, scale=scale, shift=shift,
                             residual=res2d, relu=relu, out_dtype=out_dtype)
    return out.reshape(N, Do, Ho, Wo, O)


def pallas_bn_relu(x, scale, shift):
    """Eval-mode BN (folded scale/shift) + ReLU on a channels-last activation.
    Rows are regrouped so the lane dimension is a multiple of 128."""
    N, D, H, W, C = x.shape
    R = N * D * H * W
    g = 1 if C % 128 == 0 else 128 // math.gcd(C, 128)
    L = g * C                                   # multiple of 128
    Rg = _round_up(R, g)
    x2 = x.reshape(R, C)
    if Rg != R:
        x2 = jnp.pad(x2, ((0, Rg - R), (0, 0)))
    R2 = Rg // g
    x2 = x2.reshape(R2, L)
    rt = min(512, _round_up(max(8, (R2 + 1) // 2), 8))
    R2p = _round_up(R2, rt)
    if R2p != R2:
        x2 = jnp.pad(x2, ((0, R2p - R2), (0, 0)))
    s2 = jnp.tile(scale.astype(jnp.float32), g).reshape(1, L)
    t2 = jnp.tile(shift.astype(jnp.float32), g).reshape(1, L)
    y2 = pl.pallas_call(
        _bn_relu_kernel,
        out_shape=jax.ShapeDtypeStruct((R2p, L), x.dtype),
        grid_spec=pltpu.PrefetchScalarGridSpec(
            num_scalar_prefetch=0,
            grid=(R2p // rt,),
            in_specs=[pl.BlockSpec((rt, L), lambda i: (i, 0)),
                      pl.BlockSpec((1, L), lambda i: (0, 0)),
                      pl.BlockSpec((1, L), lambda i: (0, 0))],
            out_specs=pl.BlockSpec((rt, L), lambda i: (i, 0))),
        compiler_params=pltpu.CompilerParams(
            dimension_semantics=("parallel",),
            vmem_limit_bytes=_VMEM_LIMIT),
    )(x2, s2, t2)
    return y2[:R2].reshape(Rg, C)[:R].reshape(N, D, H, W, C)


def pallas_head(x, scale, shift, fc_w):
    """Fused non-affine BN + ReLU + global average pool + FC.
    x: (N, S, C); fc_w: (C, num_classes)."""
    N, S, C = x.shape
    num_classes = fc_w.shape[1]
    return pl.pallas_call(
        functools.partial(_head_kernel, denom=float(S)),
        out_shape=jax.ShapeDtypeStruct((N, num_classes), jnp.float32),
    )(x, scale.reshape(1, 1, C).astype(jnp.float32),
      shift.reshape(1, 1, C).astype(jnp.float32),
      fc_w.astype(jnp.float32))


# ----------------------------------------------------------------------------
# Parameters (deterministic init, PyTorch layout) and inference packing
# ----------------------------------------------------------------------------
class KeyGen:
    def __init__(self, seed):
        self.key = jax.random.PRNGKey(seed)

    def __call__(self):
        self.key, sub = jax.random.split(self.key)
        return sub


def _conv_init(kg, shape):
    fan_in = int(math.prod(shape[1:]))
    return jax.random.normal(kg(), shape, jnp.float32) * math.sqrt(2.0 / fan_in)


def _bn_init(kg, c, affine):
    p = {
        "mean": 0.1 * jax.random.normal(kg(), (c,), jnp.float32),
        "var": 0.5 + 0.2 * jnp.abs(jax.random.normal(kg(), (c,), jnp.float32)),
    }
    if affine:
        p["gamma"] = 1.0 + 0.1 * jax.random.normal(kg(), (c,), jnp.float32)
        p["beta"] = 0.1 * jax.random.normal(kg(), (c,), jnp.float32)
    else:
        p["gamma"] = None
        p["beta"] = None
    return p


def init_params(seed=0, init_channels=8, num_blocks=(1, 1, 1, 1), num_classes=10):
    """PreActResNet3D with PreActBlock (expansion = 1), PyTorch weight layout."""
    kg = KeyGen(seed)
    c = init_channels
    params = {"conv1_w": _conv_init(kg, (c, 3, 3, 7, 7))}
    in_planes = c

    def make_layer(planes, nb, stride):
        nonlocal in_planes
        blocks = []
        for s in [stride] + [1] * (nb - 1):
            blk = {
                "stride": s,
                "bn1": _bn_init(kg, in_planes, affine=True),
                "conv1_w": _conv_init(kg, (planes, in_planes, 3, 3, 3)),
                "bn2": _bn_init(kg, planes, affine=True),
                "conv2_w": _conv_init(kg, (planes, planes, 3, 3, 3)),
            }
            if s != 1 or in_planes != planes:
                blk["shortcut_w"] = _conv_init(kg, (planes, in_planes, 1, 1, 1))
            in_planes = planes
            blocks.append(blk)
        return blocks

    params["layer1"] = make_layer(c, num_blocks[0], 1)
    params["layer2"] = make_layer(2 * c, num_blocks[1], 2)
    params["layer3"] = make_layer(4 * c, num_blocks[2], 2)
    params["layer4"] = make_layer(8 * c, num_blocks[3], 2)
    params["bn"] = _bn_init(kg, 8 * c, affine=False)      # affine=False
    params["fc_w"] = 0.05 * jax.random.normal(kg(), (num_classes, 8 * c),
                                              jnp.float32)
    # linear_norm=10.0 is unused in the reference forward pass.
    return params


def pack_params(params, eps=1e-5):
    """One-time packing for inference: conv weights -> (K, O) bf16 (channel-major),
    BatchNorm folded to per-channel f32 scale/shift, fc -> (C, classes) f32."""
    def pack_conv(w):
        return jnp.asarray(w.reshape(w.shape[0], -1).T, dtype=ACT_DTYPE)

    def fold_bn(bn):
        inv = 1.0 / jnp.sqrt(bn["var"] + eps)
        scale = inv if bn["gamma"] is None else bn["gamma"] * inv
        shift = (-bn["mean"] * scale if bn["beta"] is None
                 else bn["beta"] - bn["mean"] * scale)
        return scale.astype(jnp.float32), shift.astype(jnp.float32)

    packed = {"conv1_w": pack_conv(params["conv1_w"])}
    for layer in ("layer1", "layer2", "layer3", "layer4"):
        blocks = []
        for blk in params[layer]:
            s1, t1 = fold_bn(blk["bn1"])
            s2, t2 = fold_bn(blk["bn2"])
            pb = {"stride": blk["stride"],
                  "bn1_scale": s1, "bn1_shift": t1,
                  "conv1_w": pack_conv(blk["conv1_w"]),
                  "bn2_scale": s2, "bn2_shift": t2,
                  "conv2_w": pack_conv(blk["conv2_w"])}
            if "shortcut_w" in blk:
                pb["shortcut_w"] = pack_conv(blk["shortcut_w"])
            blocks.append(pb)
        packed[layer] = blocks
    packed["bn_scale"], packed["bn_shift"] = fold_bn(params["bn"])
    packed["fc_w"] = params["fc_w"].T.astype(jnp.float32)
    return packed


# ----------------------------------------------------------------------------
# Forward pass
# ----------------------------------------------------------------------------
def preact_block_forward(x, blk):
    """PreActBlock: pre = relu(bn1(x)); sc = shortcut(pre) or x;
       out = conv2(relu(bn2(conv1(pre)))) + sc   (bn2+relu and +sc fused)."""
    s = blk["stride"]
    pre = pallas_bn_relu(x, blk["bn1_scale"], blk["bn1_shift"])
    if "shortcut_w" in blk:
        shortcut = conv3d_fused(pre, blk["shortcut_w"], (1, 1, 1),
                                (s, s, s), (0, 0, 0))
    else:
        shortcut = x
    out = conv3d_fused(pre, blk["conv1_w"], (3, 3, 3), (s, s, s), (1, 1, 1),
                       scale=blk["bn2_scale"], shift=blk["bn2_shift"], relu=True)
    out = conv3d_fused(out, blk["conv2_w"], (3, 3, 3), (1, 1, 1), (1, 1, 1),
                       residual=shortcut)
    return out


def forward(packed, x_ncdhw):
    # One layout change at the entry: NCDHW -> channels-last bf16.
    x = jnp.transpose(x_ncdhw, (0, 2, 3, 4, 1)).astype(ACT_DTYPE)
    # stem: conv1 (3 -> c, k=(3,7,7), stride=(1,2,2), pad=(1,3,3)) + fused ReLU
    out = conv3d_fused(x, packed["conv1_w"], (3, 7, 7), (1, 2, 2), (1, 3, 3),
                       relu=True)
    for layer in ("layer1", "layer2", "layer3", "layer4"):
        for blk in packed[layer]:
            out = preact_block_forward(out, blk)
    N, D, H, W, C = out.shape
    # non-affine BN + ReLU + avgpool + FC in a single fused head kernel
    return pallas_head(out.reshape(N, D * H * W, C),
                       packed["bn_scale"], packed["bn_shift"], packed["fc_w"])


# ----------------------------------------------------------------------------
# Self test: im2col feature ordering + fused matmul vs lax.conv_general_dilated
# ----------------------------------------------------------------------------
def _self_test_conv():
    k1, k2 = jax.random.split(jax.random.PRNGKey(42))
    x = jax.random.normal(k1, (1, 4, 3, 6, 5), jnp.float32)          # NCDHW
    w = 0.2 * jax.random.normal(k2, (5, 4, 3, 3, 3), jnp.float32)    # OIDHW
    ref = lax.conv_general_dilated(
        x, w, window_strides=(1, 2, 1), padding=[(1, 1), (1, 1), (1, 1)],
        dimension_numbers=("NCDHW", "OIDHW", "NCDHW"))
    x_cl = jnp.transpose(x, (0, 2, 3, 4, 1)).astype(ACT_DTYPE)
    w_p = w.reshape(5, -1).T.astype(ACT_DTYPE)
    out = conv3d_fused(x_cl, w_p, (3, 3, 3), (1, 2, 1), (1, 1, 1),
                       out_dtype=jnp.float32)
    out = jnp.transpose(out, (0, 4, 1, 2, 3))
    err = float(jnp.max(jnp.abs(out - ref)))
    ref_max = float(jnp.max(jnp.abs(ref)))
    assert err <= 0.03 * ref_max + 1e-2, ("conv self-test failed", err, ref_max)


if __name__ == "__main__":
    _self_test_conv()

    params = init_params(seed=0, init_channels=8,
                         num_blocks=(1, 1, 1, 1), num_classes=10)
    packed = pack_params(params)

    key = jax.random.PRNGKey(0)
    # Small NCDHW input: batch=2, channels=3 (RGB), D=4, H=W=16
    x = jax.random.normal(key, (2, 3, 4, 16, 16), jnp.float32)

    fwd = jax.jit(lambda inp: forward(packed, inp))
    logits = fwd(x)
    jax.block_until_ready(logits)
    assert logits.shape == (2, 10)
    assert bool(jnp.all(jnp.isfinite(logits)))
    print("KERNEL_OK")
</pallas_src>

<mosaic_0001>
module attributes {stable_mosaic.version = 11 : i64} {
  func.func @kernel(%arg0: i32, %arg1: memref<24x108xbf16, #tpu.memory_space<vmem>>, %arg2: memref<108x5xbf16, #tpu.memory_space<vmem>>, %arg3: memref<24x5xf32, #tpu.memory_space<vmem>>) attributes {dimension_semantics = [#tpu.dimension_semantics<parallel>], iteration_bounds = array<i64: 2>, scalar_prefetch = 0 : i64, scratch_operands = 0 : i64, tpu.core_type = #tpu.core_type<tc>, window_params = [{transform_indices = @transform_0, window_bounds = array<i64: 24, 108>}, {pipeline_mode = #tpu.pipeline_mode<synchronous>, transform_indices = @transform_1, window_bounds = array<i64: 108, 5>}, {transform_indices = @transform_2, window_bounds = array<i64: 24, 5>}]} {
    %c0 = arith.constant 0 : index
    %c0_0 = arith.constant 0 : index
    %0 = vector.load %arg1[%c0, %c0_0] : memref<24x108xbf16, #tpu.memory_space<vmem>>, vector<24x108xbf16>
    %c0_1 = arith.constant 0 : index
    %c0_2 = arith.constant 0 : index
    %1 = vector.load %arg2[%c0_1, %c0_2] : memref<108x5xbf16, #tpu.memory_space<vmem>>, vector<108x5xbf16>
    %cst = arith.constant dense<0.000000e+00> : vector<24x5xf32>
    %2 = tpu.matmul %0, %1, %cst {dimension_numbers = #tpu.dot_dimension_numbers<[1], [0], [0], [1], [0, 0, 1, 1], [], []>} : vector<24x108xbf16>, vector<108x5xbf16>, vector<24x5xf32> -> vector<24x5xf32>
    %c0_3 = arith.constant 0 : index
    %c0_4 = arith.constant 0 : index
    %3 = vector.load %arg3[%c0_3, %c0_4] : memref<24x5xf32, #tpu.memory_space<vmem>>, vector<24x5xf32>
    tpu.vector_store %arg3[%c0_3, %c0_4], %2 {strides = array<i32>} : memref<24x5xf32, #tpu.memory_space<vmem>>, vector<24x5xf32>,
    return
  }
  func.func @transform_0(%arg0: i32) -> (i32, i32) {
    %c0_i32 = arith.constant 0 : i32
    %c0_i32_0 = arith.constant 0 : i32
    return %arg0, %c0_i32 : i32, i32
  }
  func.func @transform_1(%arg0: i32) -> (i32, i32) {
    %c0_i32 = arith.constant 0 : i32
    %c0_i32_0 = arith.constant 0 : i32
    %c0_i32_1 = arith.constant 0 : i32
    return %c0_i32, %c0_i32_0 : i32, i32
  }
  func.func @transform_2(%arg0: i32) -> (i32, i32) {
    %c0_i32 = arith.constant 0 : i32
    %c0_i32_0 = arith.constant 0 : i32
    return %arg0, %c0_i32 : i32, i32
  }
}

</mosaic_0001>

<llo_original>
// kernel: tpu_custom_call.1
$region0: #{tpu_custom_call.1}
  #allocation0 [shape = 'u32[]', space=smem, size = 0x4, offset = 0x4, fixed_abs, tag = 'smem constant byte address 0x4 - core index']
  #allocation1 [shape = 'u32[72,128]{1,0:T(1,128)}', space=vmem, size = 0x9000, scoped, tag = 'internal scratch']
  %s0 = inlined_call_operand.vmem [shape: bf16[48,108], index: 0, kind: input, shape index: {}]
  %s1 = inlined_call_operand.vmem [shape: bf16[108,5], index: 1, kind: input, shape index: {}]
  %s2 = inlined_call_operand.vmem [shape: f32[48,5], index: 2, kind: output, shape index: {}]
  %s3 = sld [smem:[#allocation0]]
  $region41: #{tpu_custom_call.1} parent=0
    _
  %s5 = ssub.s32 1, %s3
  %s6 = scalar_select 0, %s5, %s3
  loop: start=0, step=1, limit=4
  $region2: #{tpu_custom_call.1} parent=0 // loop_pre_header
    _
  $region3: #{tpu_custom_call.1} parent=0 // loop_header
    %s8 = sphi 0, %s12
    %p9 = scmp.ge.s32.totalorder %s8, 4
    %s18 = sphi 0, %s20
    %s21 = sphi 0, %s18
    %s22 = sphi 0, %s21
    %s38 = sphi 0, %s22
    %s42 = sphi 0, %s42
    %s44 = sphi 0, %s42
    %s45 = sphi 0, %s44
    %s59 = sphi 0, %s45
    %s65 = sphi 0, %s67
    %s68 = sphi 0, %s65
    %s69 = sphi 0, %s68
    %s85 = sphi 0, %s69
  $region4: #{tpu_custom_call.1} parent=0 // loop_header_branch
    %11 = sbr.rel (%p9) target = $region8
  $region5: #{tpu_custom_call.1} parent=0 // loop_body
    %s13 = ssub.s32 %s8, 1
    %s14 = ssub.s32 %s8, 2
    %s15 = sadd.s32 %s8, 1
    %s16 = ssub.s32 %s8, %s15
    %p17 = scmp.eq.s32.totalorder %s16, 0
    %s19 = sadd.s32 %s18, 1
    %s20 = scalar_select %p17, %s18, %s19
    %p23 = pneg %p17
    %p24 = scmp.eq.s32.totalorder %s8, 1
    %p25 = por %p23, %p24
    %p26 = scmp.ne.s32.totalorder %s18, %s21
    %p27 = scmp.eq.s32.totalorder %s8, 0
    %p28 = por %p26, %p27
    %p29 = scmp.ne.s32.totalorder %s18, %s21
    %p30 = scmp.eq.s32.totalorder %s13, 1
    %p31 = por %p29, %p30
    %p32 = scmp.ne.s32.totalorder %s21, %s22
    %p33 = scmp.eq.s32.totalorder %s13, 0
    %p34 = por %p32, %p33
    %p35 = scmp.ne.s32.totalorder %s21, %s22
    %p36 = scmp.eq.s32.totalorder %s14, 1
    %p37 = por %p35, %p36
    %p39 = scmp.ne.s32.totalorder %s22, %s38
    %p40 = scmp.eq.s32.totalorder %s14, 0
    %p41 = por %p39, %p40
    %s43 = sadd.s32 %s42, 1
    %p46 = scmp.eq.s32.totalorder %s8, 1
    %p47 = scmp.ne.s32.totalorder %s42, %s44
    %p48 = scmp.eq.s32.totalorder %s8, 0
    %p49 = por %p47, %p48
    %p50 = scmp.ne.s32.totalorder %s42, %s44
    %p51 = scmp.eq.s32.totalorder %s13, 1
    %p52 = por %p50, %p51
    %p53 = scmp.ne.s32.totalorder %s44, %s45
    %p54 = scmp.eq.s32.totalorder %s13, 0
    %p55 = por %p53, %p54
    %p56 = scmp.ne.s32.totalorder %s44, %s45
    %p57 = scmp.eq.s32.totalorder %s14, 1
    %p58 = por %p56, %p57
    %p60 = scmp.ne.s32.totalorder %s45, %s59
    %p61 = scmp.eq.s32.totalorder %s14, 0
    %p62 = por %p60, %p61
    %s63 = ssub.s32 %s8, %s15
    %p64 = scmp.eq.s32.totalorder %s63, 0
    %s66 = sadd.s32 %s65, 1
    %s67 = scalar_select %p64, %s65, %s66
    %p70 = pneg %p64
    %p71 = scmp.eq.s32.totalorder %s8, 1
    %p72 = por %p70, %p71
    %p73 = scmp.ne.s32.totalorder %s65, %s68
    %p74 = scmp.eq.s32.totalorder %s8, 0
    %p75 = por %p73, %p74
    %p76 = scmp.ne.s32.totalorder %s65, %s68
    %p77 = scmp.eq.s32.totalorder %s13, 1
    %p78 = por %p76, %p77
    %p79 = scmp.ne.s32.totalorder %s68, %s69
    %p80 = scmp.eq.s32.totalorder %s13, 0
    %p81 = por %p79, %p80
    %p82 = scmp.ne.s32.totalorder %s68, %s69
    %p83 = scmp.eq.s32.totalorder %s14, 1
    %p84 = por %p82, %p83
    %p86 = scmp.ne.s32.totalorder %s69, %s85
    %p87 = scmp.eq.s32.totalorder %s14, 0
    %p88 = por %p86, %p87
    %p89 = scmp.le.s32.totalorder 1, %s8
    %p90 = scmp.lt.s32.totalorder %s8, 3
    %p91 = pnand %p89, %p90
    %p92 = pneg %p91
    // Predicated region
    $region9: #{tpu_custom_call.1} parent=5 // pred_check
      _
    $region10: #{tpu_custom_call.1} parent=5 // pred_check_branch
      %94 = sbr.rel (%p91) target = $region12
    $region11: #{tpu_custom_call.1} parent=5 // pred_region
      %s95 = ssub.s32 %s8, 1
      // Predicated region
      $region13: #{tpu_custom_call.1} parent=11 // pred_check
        %p96 = pneg %p55
      $region14: #{tpu_custom_call.1} parent=11 // pred_check_branch
        %98 = sbr.rel (%p96) target = $region16
      $region15: #{tpu_custom_call.1} parent=11 // pred_region
        _
      $region16: #{tpu_custom_call.1} parent=11 // pred_fallthru
        _
    $region12: #{tpu_custom_call.1} parent=5 // pred_fallthru
      _
    %p99 = scmp.lt.s32.totalorder %s8, 2
    // Predicated region
    $region17: #{tpu_custom_call.1} parent=5 // pred_check
      %p100 = pneg %p99
    $region18: #{tpu_custom_call.1} parent=5 // pred_check_branch
      %102 = sbr.rel (%p100) target = $region20
    $region19: #{tpu_custom_call.1} parent=5 // pred_region
      // Predicated region
      $region21: #{tpu_custom_call.1} parent=19 // pred_check
        %p103 = pneg %p28
      $region22: #{tpu_custom_call.1} parent=19 // pred_check_branch
        %105 = sbr.rel (%p103) target = $region24
      $region23: #{tpu_custom_call.1} parent=19 // pred_region
        %s106 = smul.u32 3, %s8
        %p107 = scmp.lt.s32.totalorder %s106, 5
        %s108 = scalar_select %p107, %s106, 5
        %s109 = smul.addr %s108, 4
        %s110 = scalar_lea.vmem %s0, %s109
        %s111 = smul.u32 3, %s8
      $region24: #{tpu_custom_call.1} parent=19 // pred_fallthru
        _
    $region20: #{tpu_custom_call.1} parent=5 // pred_fallthru
      _
    %p112 = scmp.le.s32.totalorder 1, %s8
    %p113 = scmp.lt.s32.totalorder %s8, 3
    %p114 = pnand %p112, %p113
    %p115 = pneg %p114
    // Predicated region
    $region25: #{tpu_custom_call.1} parent=5 // pred_check
      _
    $region26: #{tpu_custom_call.1} parent=5 // pred_check_branch
      %117 = sbr.rel (%p114) target = $region28
    $region27: #{tpu_custom_call.1} parent=5 // pred_region
      %s118 = ssub.s32 %s8, 1
      %s119 = smul.u32 3, %s13
      %p120 = scmp.lt.s32.totalorder %s119, 5
      %s121 = scalar_select %p120, %s119, 5
      %s122 = smul.addr %s121, 4
      %s123 = scalar_lea.vmem %s0, %s122
      %p124 = pneg %p34
      %p125 = pneg %p31
      %p126 = pneg %p55
      %p127 = pneg %p52
      %p128 = pneg %p81
      %p129 = pneg %p78
      %s130 = smul.u32 3, %s13
      %p131 = scmp.lt.s32.totalorder %s130, 5
      %s132 = scalar_select %p131, %s130, 5
      %s133 = smul.addr %s132, 8
      %s134 = scalar_lea.vmem %s2, %s133
      %s135 = smul.u32 3, %s13
      %p136 = scmp.lt.s32.totalorder %s135, 5
      %s137 = scalar_select %p136, %s135, 5
      %s138 = smul.addr %s137, 4
      %s139 = scalar_lea.vmem %s0, %s138
      %s140 = smul.u32 3, %s13
      %s141 = smul.u32 3, %s13
      %p142 = scmp.lt.s32.totalorder %s141, 5
      %s143 = scalar_select %p142, %s141, 5
      %s144 = smul.addr %s143, 8
      %s145 = scalar_lea.vmem %s2, %s144
      %s146 = smul.u32 3, %s13
      %v148 = vld [vmem:[%s139] sm:$0xf]
      %v149 = vld [vmem:[%s139 + $0x4] sm:$0xf]
      %v150 = vld [vmem:[%s139 + $0x8] sm:$0xf]
      %v151 = vld [vmem:[%s1] sm:$0xf]
      %v152 = vld [vmem:[%s1 + $0x4] sm:$0xf]
      %v153 = vld [vmem:[%s1 + $0x8] sm:$0xf]
      %v154 = vld [vmem:[%s1 + $0xc] sm:$0xf]
      %v155 = vld [vmem:[%s1 + $0x10] sm:$0xf]
      %v156 = vld [vmem:[%s1 + $0x14] sm:$0xf]
      %v157 = vld [vmem:[%s1 + $0x18] sm:$0xf]
      %v158 = vld [vmem:[%s1 + $0x1c] sm:$0xf]
      %v159 = vld [vmem:[%s1 + $0x20] sm:$0xf]
      %v160 = vld [vmem:[%s1 + $0x24] sm:$0xf]
      %v161 = vld [vmem:[%s1 + $0x28] sm:$0xf]
      %v162 = vld [vmem:[%s1 + $0x2c] sm:$0xf]
      %v163 = vld [vmem:[%s1 + $0x30] sm:$0xf]
      %v164 = vld [vmem:[%s1 + $0x34] sm:$0x3]
      %v168 = vunpack.c.l.b16 %v148
      %v169 = vunpack.c.l.b16 %v149
      %v170 = vunpack.c.l.b16 %v150
      %v171 = vpack.c.b16 %v169, %v168
      %v172 = vpack.c.b16 %v170, %v170
      %v187 = vunpack.c.l.b16 %v151
      %v188 = vunpack.c.l.b16 %v152
      %v189 = vunpack.c.l.b16 %v153
      %v190 = vunpack.c.l.b16 %v154
      %v191 = vunpack.c.l.b16 %v155
      %v192 = vunpack.c.l.b16 %v156
      %v193 = vunpack.c.l.b16 %v157
      %v194 = vunpack.c.l.b16 %v158
      %v195 = vunpack.c.l.b16 %v159
      %v196 = vunpack.c.l.b16 %v160
      %v197 = vunpack.c.l.b16 %v161
      %v198 = vunpack.c.l.b16 %v162
      %v199 = vunpack.c.l.b16 %v163
      %v200 = vunpack.c.l.b16 %v164
      %v201 = vpack.c.b16 %v188, %v187
      %v202 = vpack.c.b16 %v190, %v189
      %v203 = vpack.c.b16 %v192, %v191
      %v204 = vpack.c.b16 %v194, %v193
      %v205 = vpack.c.b16 %v196, %v195
      %v206 = vpack.c.b16 %v198, %v197
      %v207 = vpack.c.b16 %v200, %v199
      %vm214 = vcmask 883712
      %v216 = vsel %vm214, %v171, 0
      %v219 = vsel %vm214, %v172, 0
      %vm221 = vcmask 1045504
      %v223 = vsel %vm221, %v207, 0
      %225 = vmatpush.bf16.msra.mxu0 0
      %226 = vmatpush.bf16.msra.mxu0 %v223
      %227 = vmatpush.bf16.msra.mxu0 %v206
      %228 = vmatpush.bf16.msra.mxu0 %v205
      %229 = vmatpush.bf16.msra.mxu0 %v204
      %230 = vmatpush.bf16.msra.mxu0 %v203
      %231 = vmatpush.bf16.msra.mxu0 %v202
      %232 = vmatpush.bf16.msra.mxu0 %v201
      %233 = vmatmul.bf16.gmra.mxu0 %v216
      %v234 = vpop.f32.mrf.mxu0
      %v235 = vadd.f32 0.0, %v234
      %v236 = vpop.f32.mrf.mxu0
      %v237 = vadd.f32 0.0, %v236
      %238 = vmatmul.bf16.gmra.mxu0 %v219
      %v239 = vpop.f32.mrf.mxu0
      %v240 = vadd.f32 0.0, %v239
      %v241 = vpop.f32.mrf.mxu0
      %242 = vdwg.mxu0
      %vm243 = vcmask 39936
      %244 = vst.msk [vmem:[%s145] sm:$0xff] %vm243, %v235
      %245 = vst.msk [vmem:[%s145 + $0x8] sm:$0xff] %vm243, %v237
      %246 = vst.msk [vmem:[%s145 + $0x10] sm:$0xff] %vm243, %v240
      %s247 = smul.u32 3, %s13
      %p248 = scmp.lt.s32.totalorder %s247, 5
      %s249 = scalar_select %p248, %s247, 5
      %s250 = smul.addr %s249, 8
      %s251 = scalar_lea.vmem %s2, %s250
      // Predicated region
      $region29: #{tpu_custom_call.1} parent=27 // pred_check
        %p252 = pneg %p78
      $region30: #{tpu_custom_call.1} parent=27 // pred_check_branch
        %254 = sbr.rel (%p252) target = $region32
      $region31: #{tpu_custom_call.1} parent=27 // pred_region
        %s255 = smul.u32 3, %s13
      $region32: #{tpu_custom_call.1} parent=27 // pred_fallthru
        _
    $region28: #{tpu_custom_call.1} parent=5 // pred_fallthru
      _
    %p256 = scmp.le.s32.totalorder 2, %s8
    // Predicated region
    $region33: #{tpu_custom_call.1} parent=5 // pred_check
      %p257 = pneg %p256
    $region34: #{tpu_custom_call.1} parent=5 // pred_check_branch
      %259 = sbr.rel (%p257) target = $region36
    $region35: #{tpu_custom_call.1} parent=5 // pred_region
      %s260 = ssub.s32 %s8, 2
      // Predicated region
      $region37: #{tpu_custom_call.1} parent=35 // pred_check
        %p261 = pneg %p84
      $region38: #{tpu_custom_call.1} parent=35 // pred_check_branch
        %263 = sbr.rel (%p261) target = $region40
      $region39: #{tpu_custom_call.1} parent=35 // pred_region
        %s264 = smul.u32 3, %s14
        %p265 = scmp.lt.s32.totalorder %s264, 5
        %s266 = scalar_select %p265, %s264, 5
        %s267 = smul.addr %s266, 8
        %s268 = scalar_lea.vmem %s2, %s267
      $region40: #{tpu_custom_call.1} parent=35 // pred_fallthru
        _
    $region36: #{tpu_custom_call.1} parent=5 // pred_fallthru
      _
  $region6: #{tpu_custom_call.1} parent=0 // loop_footer
    %s12 = sadd.s32 1, %s8
  $region7: #{tpu_custom_call.1} parent=0 // loop_footer_branch
    %7 = sbr.rel target = $region3
  $region8: #{tpu_custom_call.1} parent=0 // loop_exit
    _

</llo_original>
